<compile_context>
chip_gen: v6e
topology: v6e:2x2x1
jax: 0.10.0
libtpu: 0.0.40
codegen_flags: <defaults>
</compile_context>

<pallas_src>
import jax
import jax.numpy as jnp
from jax.experimental import pallas as pl
from jax.experimental.pallas import tpu as pltpu


def _log_sigmoid(x):
    # log(sigmoid(x)) = -softplus(-x) = min(x, 0) - log1p(exp(-|x|))
    return jnp.minimum(x, 0.0) - jnp.log1p(jnp.exp(-jnp.abs(x)))


def _make_kernel(s_actual, tile_s, n_noise, embed):
    ragged = (s_actual % tile_s) != 0

    def kernel(in_ref, out_ref, noise_ref, partial_ref):
        pid = pl.program_id(0)

        # Upcast to f32 in-kernel (v5e VPU has no bf16; compute is f32 on all gens).
        iv = in_ref[...].astype(jnp.float32)        # (TILE_S, E)
        ov = out_ref[...].astype(jnp.float32)       # (TILE_S, E)
        nv = noise_ref[...]                          # (TILE_S, N*E) native dtype
        if embed % 128 != 0:
            # Lane slices won't be tile-aligned: upcast once and slice f32 values.
            nv = nv.astype(jnp.float32)

        # Positive term dot + N negative dots, streamed so only one (TILE_S, E)
        # slab is live per step; batched into a single (TILE_S, N+1) slab.
        dots = [jnp.sum(iv * ov, axis=-1, keepdims=True)]
        for j in range(n_noise):
            nvj = nv[:, j * embed:(j + 1) * embed].astype(jnp.float32)
            dots.append(-jnp.sum(nvj * iv, axis=-1, keepdims=True))
        stacked = jnp.concatenate(dots, axis=-1)     # (TILE_S, N+1)

        row_loss = jnp.sum(_log_sigmoid(stacked), axis=-1, keepdims=True)

        # Zero the garbage rows of the ragged last block (trace-time skip if none).
        if ragged:
            row_idx = pid * tile_s + jax.lax.broadcasted_iota(
                jnp.int32, (tile_s, 1), 0)
            row_loss = jnp.where(row_idx < s_actual, row_loss, 0.0)

        total = jnp.sum(row_loss)
        # Lane-dense per-tile partial (full unmasked vst); wrapper reads [0, 0].
        partial_ref[...] = jnp.zeros((1, 8, 128), jnp.float32) + total

    return kernel


def _choose_tile_s(s, n, e, itemsize, budget_bytes=8 * 1024 * 1024):
    # ~8 MiB operand tile-set: 2-deep buffering + f32 intermediates stay well
    # under v7x's 64 MiB VMEM and the 48 MiB scoped limit we request below.
    bytes_per_row = (n + 2) * e * itemsize
    tile = budget_bytes // max(bytes_per_row, 1)
    tile = max(8, (tile // 8) * 8)
    s_ceil = max(8, ((s + 7) // 8) * 8)
    return min(tile, s_ceil)


def negative_sampling_loss(input_vectors, output_vectors, noise_vectors,
                           tile_s=None):
    s, e = input_vectors.shape
    _, n, _ = noise_vectors.shape

    # Contiguous reshape (free): packs the noise tile lane-dense, no sublane
    # padding of the small N axis and no per-n strided ref slices in-kernel.
    noise_2d = noise_vectors.reshape(s, n * e)

    itemsize = jnp.dtype(input_vectors.dtype).itemsize
    if tile_s is None:
        tile_s = _choose_tile_s(s, n, e, itemsize)
    tile_s = max(8, ((tile_s + 7) // 8) * 8)

    num_tiles = pl.cdiv(s, tile_s)
    kernel = _make_kernel(s, tile_s, n, e)

    cost = pl.CostEstimate(
        flops=2 * s * (n + 1) * e + 8 * s * (n + 1),
        transcendentals=2 * s * (n + 1),
        bytes_accessed=s * (n + 2) * e * itemsize + num_tiles * 8 * 128 * 4,
    )

    partials = pl.pallas_call(
        kernel,
        out_shape=jax.ShapeDtypeStruct((num_tiles, 8, 128), jnp.float32),
        grid=(num_tiles,),
        in_specs=[
            pl.BlockSpec((tile_s, e), lambda i: (i, 0)),
            pl.BlockSpec((tile_s, e), lambda i: (i, 0)),
            pl.BlockSpec((tile_s, n * e), lambda i: (i, 0)),
        ],
        out_specs=pl.BlockSpec((1, 8, 128), lambda i: (i, 0, 0)),
        compiler_params=pltpu.CompilerParams(
            # independent per-tile partials -> both v7x TensorCores share the grid
            dimension_semantics=("parallel",),
            vmem_limit_bytes=48 * 1024 * 1024,
        ),
        cost_estimate=cost,
    )(input_vectors, output_vectors, noise_2d)

    # Tiny cross-tile reduce + negate + mean in the wrapper (keeps the grid
    # axis parallel and improves summation accuracy vs. a single serial scalar).
    return -(jnp.sum(partials[:, 0, 0]) / jnp.float32(s))


def _reference(input_vectors, output_vectors, noise_vectors):
    pos = jnp.sum(output_vectors * input_vectors, axis=-1)
    out_loss = jnp.log(jax.nn.sigmoid(pos))
    neg = -jnp.einsum("sne,se->sn", noise_vectors, input_vectors)
    noise_loss = jnp.sum(jnp.log(jax.nn.sigmoid(neg)), axis=1)
    return -jnp.mean(out_loss + noise_loss)


if __name__ == "__main__":
    key = jax.random.PRNGKey(0)
    k1, k2, k3 = jax.random.split(key, 3)

    # small shapes consistent with the module: batch=8, embed=32, n_noise=4
    S, E, N = 8, 32, 4
    iv = jax.random.normal(k1, (S, E), dtype=jnp.float32)
    ov = jax.random.normal(k2, (S, E), dtype=jnp.float32)
    nv = jax.random.normal(k3, (S, N, E), dtype=jnp.float32)

    loss = jax.block_until_ready(negative_sampling_loss(iv, ov, nv))
    ref = _reference(iv, ov, nv)
    assert jnp.allclose(loss, ref, rtol=1e-4, atol=1e-5), (loss, ref)

    # ragged batch + multi-tile grid (exercises partial last block + row mask
    # + cross-tile partial reduction -- no wrapper padding anymore)
    S2 = 13
    k4, k5, k6 = jax.random.split(jax.random.PRNGKey(1), 3)
    iv2 = jax.random.normal(k4, (S2, E), dtype=jnp.float32)
    ov2 = jax.random.normal(k5, (S2, E), dtype=jnp.float32)
    nv2 = jax.random.normal(k6, (S2, N, E), dtype=jnp.float32)

    loss2 = jax.block_until_ready(
        negative_sampling_loss(iv2, ov2, nv2, tile_s=8))
    ref2 = _reference(iv2, ov2, nv2)
    assert jnp.allclose(loss2, ref2, rtol=1e-4, atol=1e-5), (loss2, ref2)

    # bf16-on-the-wire path: operands stay bf16 in HBM, upcast in-kernel
    iv3 = iv.astype(jnp.bfloat16)
    ov3 = ov.astype(jnp.bfloat16)
    nv3 = nv.astype(jnp.bfloat16)
    loss3 = jax.block_until_ready(negative_sampling_loss(iv3, ov3, nv3))
    ref3 = _reference(iv3.astype(jnp.float32), ov3.astype(jnp.float32),
                      nv3.astype(jnp.float32))
    assert jnp.allclose(loss3, ref3, rtol=1e-2, atol=1e-3), (loss3, ref3)

    print("KERNEL_OK")
</pallas_src>

<mosaic_0001>
module attributes {stable_mosaic.version = 11 : i64} {
  func.func @kernel(%arg0: i32, %arg1: memref<8x32xf32, #tpu.memory_space<vmem>>, %arg2: memref<8x32xf32, #tpu.memory_space<vmem>>, %arg3: memref<8x128xf32, #tpu.memory_space<vmem>>, %arg4: memref<1x8x128xf32, #tpu.memory_space<vmem>>) attributes {dimension_semantics = [#tpu.dimension_semantics<parallel>], iteration_bounds = array<i64: 1>, scalar_prefetch = 0 : i64, scratch_operands = 0 : i64, tpu.core_type = #tpu.core_type<tc>, window_params = [{transform_indices = @transform_0, window_bounds = array<i64: 8, 32>}, {transform_indices = @transform_1, window_bounds = array<i64: 8, 32>}, {transform_indices = @transform_2, window_bounds = array<i64: 8, 128>}, {transform_indices = @transform_3, window_bounds = array<i64: 1, 8, 128>}]} {
    %c0 = arith.constant 0 : index
    %c0_0 = arith.constant 0 : index
    %0 = vector.load %arg1[%c0, %c0_0] : memref<8x32xf32, #tpu.memory_space<vmem>>, vector<8x32xf32>
    %c0_1 = arith.constant 0 : index
    %c0_2 = arith.constant 0 : index
    %1 = vector.load %arg2[%c0_1, %c0_2] : memref<8x32xf32, #tpu.memory_space<vmem>>, vector<8x32xf32>
    %c0_3 = arith.constant 0 : index
    %c0_4 = arith.constant 0 : index
    %2 = vector.load %arg3[%c0_3, %c0_4] : memref<8x128xf32, #tpu.memory_space<vmem>>, vector<8x128xf32>
    %3 = arith.mulf %0, %1 : vector<8x32xf32>
    %cst = arith.constant dense<0.000000e+00> : vector<8xf32>
    %4 = vector.multi_reduction <add>, %3, %cst [1] : vector<8x32xf32> to vector<8xf32>
    %5 = vector.shape_cast %4 : vector<8xf32> to vector<8x1xf32>
    %6 = vector.extract_strided_slice %2 {offsets = [0, 0], sizes = [8, 32], strides = [1, 1]} : vector<8x128xf32> to vector<8x32xf32>
    %7 = arith.mulf %6, %0 : vector<8x32xf32>
    %cst_5 = arith.constant dense<0.000000e+00> : vector<8xf32>
    %8 = vector.multi_reduction <add>, %7, %cst_5 [1] : vector<8x32xf32> to vector<8xf32>
    %9 = vector.shape_cast %8 : vector<8xf32> to vector<8x1xf32>
    %cst_6 = arith.constant 0.000000e+00 : f32
    %10 = vector.broadcast %cst_6 : f32 to vector<8x1xf32>
    %11 = arith.subf %10, %9 : vector<8x1xf32>
    %12 = vector.extract_strided_slice %2 {offsets = [0, 32], sizes = [8, 32], strides = [1, 1]} : vector<8x128xf32> to vector<8x32xf32>
    %13 = arith.mulf %12, %0 : vector<8x32xf32>
    %cst_7 = arith.constant dense<0.000000e+00> : vector<8xf32>
    %14 = vector.multi_reduction <add>, %13, %cst_7 [1] : vector<8x32xf32> to vector<8xf32>
    %15 = vector.shape_cast %14 : vector<8xf32> to vector<8x1xf32>
    %cst_8 = arith.constant 0.000000e+00 : f32
    %16 = vector.broadcast %cst_8 : f32 to vector<8x1xf32>
    %17 = arith.subf %16, %15 : vector<8x1xf32>
    %18 = vector.extract_strided_slice %2 {offsets = [0, 64], sizes = [8, 32], strides = [1, 1]} : vector<8x128xf32> to vector<8x32xf32>
    %19 = arith.mulf %18, %0 : vector<8x32xf32>
    %cst_9 = arith.constant dense<0.000000e+00> : vector<8xf32>
    %20 = vector.multi_reduction <add>, %19, %cst_9 [1] : vector<8x32xf32> to vector<8xf32>
    %21 = vector.shape_cast %20 : vector<8xf32> to vector<8x1xf32>
    %cst_10 = arith.constant 0.000000e+00 : f32
    %22 = vector.broadcast %cst_10 : f32 to vector<8x1xf32>
    %23 = arith.subf %22, %21 : vector<8x1xf32>
    %24 = vector.extract_strided_slice %2 {offsets = [0, 96], sizes = [8, 32], strides = [1, 1]} : vector<8x128xf32> to vector<8x32xf32>
    %25 = arith.mulf %24, %0 : vector<8x32xf32>
    %cst_11 = arith.constant dense<0.000000e+00> : vector<8xf32>
    %26 = vector.multi_reduction <add>, %25, %cst_11 [1] : vector<8x32xf32> to vector<8xf32>
    %27 = vector.shape_cast %26 : vector<8xf32> to vector<8x1xf32>
    %cst_12 = arith.constant 0.000000e+00 : f32
    %28 = vector.broadcast %cst_12 : f32 to vector<8x1xf32>
    %29 = arith.subf %28, %27 : vector<8x1xf32>
    %30 = tpu.concatenate %5, %11, %17, %23, %29 in 1 : vector<8x1xf32>, vector<8x1xf32>, vector<8x1xf32>, vector<8x1xf32>, vector<8x1xf32> -> vector<8x5xf32>
    %cst_13 = arith.constant 0.000000e+00 : f32
    %31 = vector.broadcast %cst_13 : f32 to vector<8x5xf32>
    %32 = arith.minimumf %30, %31 : vector<8x5xf32>
    %33 = math.absf %30 : vector<8x5xf32>
    %cst_14 = arith.constant 0.000000e+00 : f32
    %34 = vector.broadcast %cst_14 : f32 to vector<8x5xf32>
    %35 = arith.subf %34, %33 : vector<8x5xf32>
    %36 = math.exp %35 : vector<8x5xf32>
    %37 = math.log1p %36 : vector<8x5xf32>
    %38 = arith.subf %32, %37 : vector<8x5xf32>
    %cst_15 = arith.constant dense<0.000000e+00> : vector<8xf32>
    %39 = vector.multi_reduction <add>, %38, %cst_15 [1] : vector<8x5xf32> to vector<8xf32>
    %40 = vector.shape_cast %39 : vector<8xf32> to vector<8x1xf32>
    %41 = vector.shape_cast %40 : vector<8x1xf32> to vector<1x8x1xf32>
    %cst_16 = arith.constant dense<0.000000e+00> : vector<1xf32>
    %42 = vector.multi_reduction <add>, %41, %cst_16 [1, 2] : vector<1x8x1xf32> to vector<1xf32>
    %43 = vector.shape_cast %42 : vector<1xf32> to vector<1x1x1xf32>
    %44 = vector.extract %43[0, 0, 0] : f32 from vector<1x1x1xf32>
    %cst_17 = arith.constant 0.000000e+00 : f32
    %45 = vector.broadcast %cst_17 : f32 to vector<1x8x128xf32>
    %46 = vector.broadcast %44 : f32 to vector<1x8x128xf32>
    %47 = arith.addf %45, %46 : vector<1x8x128xf32>
    %c0_18 = arith.constant 0 : index
    %c0_19 = arith.constant 0 : index
    %c0_20 = arith.constant 0 : index
    %48 = vector.load %arg4[%c0_18, %c0_19, %c0_20] : memref<1x8x128xf32, #tpu.memory_space<vmem>>, vector<1x8x128xf32>
    tpu.vector_store %arg4[%c0_18, %c0_19, %c0_20], %47 {strides = array<i32>} : memref<1x8x128xf32, #tpu.memory_space<vmem>>, vector<1x8x128xf32>,
    return
  }
  func.func @transform_0(%arg0: i32) -> (i32, i32) {
    %c0_i32 = arith.constant 0 : i32
    %c0_i32_0 = arith.constant 0 : i32
    return %arg0, %c0_i32 : i32, i32
  }
  func.func @transform_1(%arg0: i32) -> (i32, i32) {
    %c0_i32 = arith.constant 0 : i32
    %c0_i32_0 = arith.constant 0 : i32
    return %arg0, %c0_i32 : i32, i32
  }
  func.func @transform_2(%arg0: i32) -> (i32, i32) {
    %c0_i32 = arith.constant 0 : i32
    %c0_i32_0 = arith.constant 0 : i32
    return %arg0, %c0_i32 : i32, i32
  }
  func.func @transform_3(%arg0: i32) -> (i32, i32, i32) {
    %c0_i32 = arith.constant 0 : i32
    %c0_i32_0 = arith.constant 0 : i32
    %c0_i32_1 = arith.constant 0 : i32
    return %arg0, %c0_i32, %c0_i32_0 : i32, i32, i32
  }
}

</mosaic_0001>

<llo_original>
// kernel: tpu_custom_call.1
$region0: #{tpu_custom_call.1}
  #allocation0 [shape = 'u32[]', space=smem, size = 0x4, offset = 0x4, fixed_abs, tag = 'smem constant byte address 0x4 - core index']
  #allocation1 [shape = 'u32[144,128]{1,0:T(1,128)}', space=vmem, size = 0x12000, scoped, tag = 'internal scratch']
  %s0 = inlined_call_operand.hbm [shape: f32[8,32], index: 0, kind: input, shape index: {}]
  %s1 = inlined_call_operand.hbm [shape: f32[8,32], index: 1, kind: input, shape index: {}]
  %s2 = inlined_call_operand.hbm [shape: f32[8,128], index: 2, kind: input, shape index: {}]
  %s3 = inlined_call_operand.hbm [shape: f32[1,8,128], index: 3, kind: output, shape index: {}]
  %s4 = sld [smem:[#allocation0]]
  $region34: #{tpu_custom_call.1} parent=0
    _
  %s6 = ssub.s32 1, %s4
  %s7 = scalar_select 0, %s6, %s4
  $region1: #{tpu_custom_call.1} parent=0
    #allocation2 [shape = 'u8[4096]{0}', space=vmem, size = 0x1000, scoped, tag = 'input window, operand 0, single buffered']
    #allocation3 [shape = 's32[1]{0}', space=sflag, size = 0x4, scoped, tag = 'scoped memory for tpu_custom_call.1']
    #allocation4 [shape = 's32[1]{0}', space=sflag, size = 0x4, scoped, tag = 'scoped memory for tpu_custom_call.1']
    #allocation5 [shape = 'u8[4096]{0}', space=vmem, size = 0x1000, scoped, tag = 'input window, operand 1, single buffered']
    #allocation6 [shape = 's32[1]{0}', space=sflag, size = 0x4, scoped, tag = 'scoped memory for tpu_custom_call.1']
    #allocation7 [shape = 'u8[4096]{0}', space=vmem, size = 0x1000, scoped, tag = 'input window, operand 2, single buffered']
    #allocation8 [shape = 'u8[4096]{0}', space=vmem, size = 0x1000, scoped, tag = 'output window, operand 0, single buffered']
    %8 = vsyncpa [#allocation3], 0
    %9 = vsyncpa [#allocation6], 0
    %10 = vsyncpa [#allocation4], 0
    // Predicated region
    $region2: #{tpu_custom_call.1} parent=1 // pred_check
      _
    $region3: #{tpu_custom_call.1} parent=1 // pred_check_branch
      %12 = sbr.rel (0) target = $region5
    $region4: #{tpu_custom_call.1} parent=1 // pred_region
      %s14 = ssub.s32 128, 128
      %15 = vsyncadd [#allocation3], %s14
      %s17 = sshll.u32 [#allocation2], 4
      %s18 = int_to_ptr.vmem [resolvable:$true] %s17
      %20 = dma.hbm_to_vmem [thread:$0]  %s0, 128, %s18, [#allocation3]
    $region5: #{tpu_custom_call.1} parent=1 // pred_fallthru
      _
    // Predicated region
    $region6: #{tpu_custom_call.1} parent=1 // pred_check
      _
    $region7: #{tpu_custom_call.1} parent=1 // pred_check_branch
      %22 = sbr.rel (0) target = $region9
    $region8: #{tpu_custom_call.1} parent=1 // pred_region
      %s24 = ssub.s32 128, 128
      %25 = vsyncadd [#allocation6], %s24
      %s27 = sshll.u32 [#allocation5], 4
      %s28 = int_to_ptr.vmem [resolvable:$true] %s27
      %30 = dma.hbm_to_vmem [thread:$0]  %s1, 128, %s28, [#allocation6]
    $region9: #{tpu_custom_call.1} parent=1 // pred_fallthru
      _
    // Predicated region
    $region10: #{tpu_custom_call.1} parent=1 // pred_check
      _
    $region11: #{tpu_custom_call.1} parent=1 // pred_check_branch
      %32 = sbr.rel (0) target = $region13
    $region12: #{tpu_custom_call.1} parent=1 // pred_region
      %s34 = ssub.s32 128, 128
      %35 = vsyncadd [#allocation6], %s34
      %s37 = sshll.u32 [#allocation7], 4
      %s38 = int_to_ptr.vmem [resolvable:$true] %s37
      %40 = dma.hbm_to_vmem [thread:$0]  %s2, 128, %s38, [#allocation6]
    $region13: #{tpu_custom_call.1} parent=1 // pred_fallthru
      _
    // Predicated region
    $region14: #{tpu_custom_call.1} parent=1 // pred_check
      _
    $region15: #{tpu_custom_call.1} parent=1 // pred_check_branch
      %42 = sbr.rel (0) target = $region17
    $region16: #{tpu_custom_call.1} parent=1 // pred_region
      %43 = dma.done [#allocation3], 128
    $region17: #{tpu_custom_call.1} parent=1 // pred_fallthru
      _
    // Predicated region
    $region18: #{tpu_custom_call.1} parent=1 // pred_check
      _
    $region19: #{tpu_custom_call.1} parent=1 // pred_check_branch
      %45 = sbr.rel (0) target = $region21
    $region20: #{tpu_custom_call.1} parent=1 // pred_region
      %46 = dma.done [#allocation6], 128
    $region21: #{tpu_custom_call.1} parent=1 // pred_fallthru
      _
    // Predicated region
    $region22: #{tpu_custom_call.1} parent=1 // pred_check
      _
    $region23: #{tpu_custom_call.1} parent=1 // pred_check_branch
      %48 = sbr.rel (0) target = $region25
    $region24: #{tpu_custom_call.1} parent=1 // pred_region
      %49 = dma.done [#allocation6], 128
    $region25: #{tpu_custom_call.1} parent=1 // pred_fallthru
      _
    %v50 = vld [vmem:[#allocation2] sm:$0xff]
    %v51 = vld [vmem:[#allocation5] sm:$0xff]
    %v52 = vld [vmem:[#allocation7] sm:$0xff]
    %v53 = vmul.f32 %v50, %v51
    %vm54 = vcmask 261120
    %v55 = vsel %vm54, %v53, 0.0
    %56 = vadd.xlane.f32.xlu0 %v55
    %v57 = vpop.xlane.xlu0 %56
    %v58 = vmul.f32 %v52, %v50
    %v59 = vsel %vm54, %v58, 0.0
    %60 = vadd.xlane.f32.xlu0 %v59
    %v61 = vpop.xlane.xlu0 %60
    %v62 = vsub.f32 0.0, %v61
    %64 = vrot.lane.b32.xlu0 %v50, 32
    %v65 = vpop.permute.xlu0 %64
    %v67 = vmul.f32 %v52, %v65
    %69 = vrot.lane.b32.xlu0 %v67, 96
    %v70 = vpop.permute.xlu0 %69
    %v72 = vsel %vm54, %v70, 0.0
    %73 = vadd.xlane.f32.xlu0 %v72
    %v74 = vpop.xlane.xlu0 %73
    %v75 = vsub.f32 0.0, %v74
    %76 = vrot.lane.b32.xlu0 %v50, 64
    %v77 = vpop.permute.xlu0 %76
    %v79 = vmul.f32 %v52, %v77
    %81 = vrot.lane.b32.xlu0 %v79, 64
    %v82 = vpop.permute.xlu0 %81
    %v84 = vsel %vm54, %v82, 0.0
    %85 = vadd.xlane.f32.xlu0 %v84
    %v86 = vpop.xlane.xlu0 %85
    %v87 = vsub.f32 0.0, %v86
    %88 = vrot.lane.b32.xlu0 %v50, 96
    %v89 = vpop.permute.xlu0 %88
    %v91 = vmul.f32 %v52, %v89
    %93 = vrot.lane.b32.xlu0 %v91, 32
    %v94 = vpop.permute.xlu0 %93
    %v96 = vsel %vm54, %v94, 0.0
    %97 = vadd.xlane.f32.xlu0 %v96
    %v98 = vpop.xlane.xlu0 %97
    %v99 = vsub.f32 0.0, %v98
    %vm100 = vcmask 7168
    %v101 = vsel %vm100, %v57, %v62
    %vm102 = vcmask 15360
    %v103 = vsel %vm102, %v101, %v75
    %vm104 = vcmask 23552
    %v105 = vsel %vm104, %v103, %v87
    %vm106 = vcmask 31744
    %v107 = vsel %vm106, %v105, %v99
    %v108 = vmin.f32 %v107, 0.0
    %v109 = vand.u32 2147483647, %v107
    %v110 = vsub.f32 0.0, %v109
    %v111 = vmul.f32 %v110, 1.442695
    %v112 = vpow.pop %v111
    %v113 = vadd.f32 %v112, 1.0
    %v114 = vlog2.pop %v113
    %v115 = vmul.f32 %v114, 0.6931472
    %v116 = vmul.f32 -0.5, %v112
    %v117 = vadd.f32 %v116, 1.0
    %v118 = vmul.f32 %v117, %v112
    %v119 = vand.u32 2147483647, %v112
    %vm120 = vcmp.lt.f32.partialorder %v119, 0.0004427343
    %v121 = vsel %vm120, %v118, %v115
    %v122 = vsub.f32 %v108, %v121
    %vm123 = vcmask 39936
    %v124 = vsel %vm123, %v122, 0.0
    %125 = vadd.xlane.f32.xlu0 %v124
    %v126 = vpop.xlane.xlu0 %125
    %v127 = vsel %vm100, %v126, 0.0
    %128 = vadd.xlane.f32.xlu0 %v127
    %v129 = vpop.xlane.xlu0 %128
    %v130 = vrot.slane %v129, 4
    %v131 = vadd.f32 %v129, %v130
    %v132 = vrot.slane %v131, 2
    %v133 = vadd.f32 %v131, %v132
    %v134 = vrot.slane %v133, 1
    %v135 = vadd.f32 %v133, %v134
    %s136 = vtos %v135
    %v137 = vstv %s136
    %v138 = vadd.f32 %v137, 0.0
    %139 = vst [vmem:[#allocation8] sm:$0xff] %v138
    // Predicated region
    $region26: #{tpu_custom_call.1} parent=1 // pred_check
      _
    $region27: #{tpu_custom_call.1} parent=1 // pred_check_branch
      %141 = sbr.rel (0) target = $region29
    $region28: #{tpu_custom_call.1} parent=1 // pred_region
      %s143 = ssub.s32 128, 128
      %144 = vsyncadd [#allocation4], %s143
      %s146 = sshll.u32 [#allocation8], 4
      %s147 = int_to_ptr.vmem [resolvable:$true] %s146
      %149 = dma.vmem_to_hbm [thread:$0]  %s147, 128, %s3, [#allocation4]
    $region29: #{tpu_custom_call.1} parent=1 // pred_fallthru
      _
    // Predicated region
    $region30: #{tpu_custom_call.1} parent=1 // pred_check
      _
    $region31: #{tpu_custom_call.1} parent=1 // pred_check_branch
      %151 = sbr.rel (0) target = $region33
    $region32: #{tpu_custom_call.1} parent=1 // pred_region
      %152 = dma.done [#allocation4], 128
    $region33: #{tpu_custom_call.1} parent=1 // pred_fallthru
      _
    %153 = vsyncpa [#allocation3], 1
    %154 = vsyncpa [#allocation6], 1
    %155 = vsyncpa [#allocation4], 1

</llo_original>
